<compile_context>
chip_gen: v7x
topology: tpu7x:2x2x1
jax: 0.10.0
libtpu: 0.0.40
codegen_flags: <defaults>
</compile_context>

<pallas_src>
import jax
import jax.numpy as jnp
from jax.experimental import pallas as pl
from jax.experimental.pallas import tpu as pltpu


def _round_up(a: int, b: int) -> int:
    return ((a + b - 1) // b) * b


def _cdiv(a: int, b: int) -> int:
    return (a + b - 1) // b


def _linear_fm_kernel(w_ref, b_ref, x_ref, o_ref):
    # w_ref: (OUT*IN,) f32 SMEM   b_ref: (OUT,) f32 SMEM
    # x_ref: (IN, TILE_N)  VMEM   o_ref: (OUT, TILE_N) VMEM
    in_f = x_ref.shape[0]
    out_f = o_ref.shape[0]
    for o in range(out_f):                              # OUT == 1: fully unrolled
        # Unrolled VPU FMA chain over the 5 input features, f32 accumulation.
        acc = x_ref[0:1, :].astype(jnp.float32) * w_ref[o * in_f + 0]
        for f in range(1, in_f):
            acc = acc + x_ref[f:f + 1, :].astype(jnp.float32) * w_ref[o * in_f + f]
        o_ref[o:o + 1, :] = (acc + b_ref[o]).astype(o_ref.dtype)


def ap_model_forward(x, w, b, *,
                     x_feature_major=False,
                     min_pallas_rows=32768,
                     max_tile_n=64 * 1024,
                     min_tiles=2,
                     stream_dtype=None):
    """Pallas equivalent of APModel.forward.

    x: (N, 5) float (or (5, N) if x_feature_major=True), w: (1, 5), b: (1,)
    returns (N, 1).
    """
    if x_feature_major:
        in_f, n = x.shape
    else:
        n, in_f = x.shape
    out_f = w.shape[0]
    out_dtype = x.dtype

    # ---- Small-batch fast path: plain fused XLA beats a pallas_call launch. --
    if n < min_pallas_rows:
        x_nm = x.T if x_feature_major else x
        return (x_nm @ w.T.astype(x_nm.dtype) + b.astype(x_nm.dtype)).astype(out_dtype)

    # ---- Tile selection: large lane-dense tiles, even count (>=2) for v7x. ---
    num_tiles = max(min_tiles, _cdiv(n, max_tile_n))
    if num_tiles % 2:
        num_tiles += 1
    tile_n = _round_up(_cdiv(n, num_tiles), 128)
    n_pad = num_tiles * tile_n

    x_itemsize = jnp.dtype(stream_dtype).itemsize if stream_dtype is not None \
        else jnp.dtype(x.dtype).itemsize
    # Double-buffered x tile (5 -> 8 sublanes) + double-buffered out tile (1 -> 8).
    vmem_bytes = (2 * _round_up(in_f, 8) * tile_n * x_itemsize
                  + 2 * _round_up(out_f, 8) * tile_n * jnp.dtype(out_dtype).itemsize)
    vmem_limit = int(min(max(vmem_bytes + (4 << 20), 16 << 20), 32 << 20))

    # ---- Feature-major layout + padding (single fused XLA pass). -------------
    x_fm = x if x_feature_major else x.T                     # (IN, N)
    if stream_dtype is not None:
        x_fm = x_fm.astype(stream_dtype)
    if n_pad != n:
        x_fm = jnp.pad(x_fm, ((0, 0), (0, n_pad - n)))       # (IN, N_pad)

    w_flat = w.reshape(-1).astype(jnp.float32)               # (OUT*IN,) -> SMEM
    b_flat = b.reshape(-1).astype(jnp.float32)               # (OUT,)    -> SMEM

    cost = pl.CostEstimate(
        flops=2 * in_f * out_f * n_pad,
        transcendentals=0,
        bytes_accessed=(in_f * x_itemsize
                        + out_f * jnp.dtype(out_dtype).itemsize) * n_pad,
    )

    y_fm = pl.pallas_call(
        _linear_fm_kernel,
        out_shape=jax.ShapeDtypeStruct((out_f, n_pad), out_dtype),
        grid_spec=pltpu.PrefetchScalarGridSpec(
            num_scalar_prefetch=0,
            grid=(num_tiles,),
            in_specs=[
                pl.BlockSpec(memory_space=pltpu.MemorySpace.SMEM),   # weights
                pl.BlockSpec(memory_space=pltpu.MemorySpace.SMEM),   # bias
                pl.BlockSpec((in_f, tile_n), lambda i: (0, i)),      # x tile
            ],
            out_specs=pl.BlockSpec((out_f, tile_n), lambda i: (0, i)),
        ),
        compiler_params=pltpu.CompilerParams(
            dimension_semantics=("parallel",),
            vmem_limit_bytes=vmem_limit,
        ),
        cost_estimate=cost,
    )(w_flat, b_flat, x_fm)

    return y_fm[:, :n].T                                      # (N, OUT)


if __name__ == "__main__":
    key = jax.random.PRNGKey(0)
    kx, kw, kb, kx2 = jax.random.split(key, 4)

    IN_F, OUT_F = 5, 1

    # Deterministic parameter init (mimics torch's uniform(-1/sqrt(fan_in), +)).
    bound = 1.0 / (IN_F ** 0.5)
    w = jax.random.uniform(kw, (OUT_F, IN_F), jnp.float32, -bound, bound)
    b = jax.random.uniform(kb, (OUT_F,), jnp.float32, -bound, bound)

    # Small batch, force the Pallas path (min_pallas_rows=0) so the kernel runs.
    N = 8
    x = jax.random.normal(kx, (N, IN_F), jnp.float32)
    out = ap_model_forward(x, w, b, min_pallas_rows=0)
    jax.block_until_ready(out)
    ref = x @ w.T + b
    assert out.shape == (N, OUT_F)
    assert jnp.allclose(out, ref, atol=1e-5, rtol=1e-5)

    # Non-tile-aligned batch: multi-tile padded Pallas path.
    N2 = 1337
    x2 = jax.random.normal(kx2, (N2, IN_F), jnp.float32)
    out2 = ap_model_forward(x2, w, b, min_pallas_rows=0)
    jax.block_until_ready(out2)
    ref2 = x2 @ w.T + b
    assert out2.shape == (N2, OUT_F)
    assert jnp.allclose(out2, ref2, atol=1e-5, rtol=1e-5)

    # Feature-major input: skips the wrapper transpose pass entirely.
    out2_fm = ap_model_forward(x2.T, w, b, x_feature_major=True, min_pallas_rows=0)
    jax.block_until_ready(out2_fm)
    assert out2_fm.shape == (N2, OUT_F)
    assert jnp.allclose(out2_fm, ref2, atol=1e-5, rtol=1e-5)

    # Default dispatch for small N uses the fused-XLA fast path.
    out2_fast = ap_model_forward(x2, w, b)
    jax.block_until_ready(out2_fast)
    assert jnp.allclose(out2_fast, ref2, atol=1e-5, rtol=1e-5)

    print("KERNEL_OK")
</pallas_src>

<mosaic_0001>
module attributes {stable_mosaic.version = 11 : i64} {
  func.func @_linear_fm_kernel(%arg0: i32, %arg1: memref<5xf32, #tpu.memory_space<smem>>, %arg2: memref<1xf32, #tpu.memory_space<smem>>, %arg3: memref<5x128xf32, #tpu.memory_space<vmem>>, %arg4: memref<1x128xf32, #tpu.memory_space<vmem>>) attributes {dimension_semantics = [#tpu.dimension_semantics<parallel>], iteration_bounds = array<i64: 2>, scalar_prefetch = 0 : i64, scratch_operands = 0 : i64, tpu.core_type = #tpu.core_type<tc>, window_params = [{transform_indices = @transform_0, window_bounds = array<i64: 5>}, {transform_indices = @transform_1, window_bounds = array<i64: 1>}, {transform_indices = @transform_2, window_bounds = array<i64: 5, 128>}, {transform_indices = @transform_3, window_bounds = array<i64: 1, 128>}]} {
    %c0 = arith.constant 0 : index
    %c0_0 = arith.constant 0 : index
    %0 = vector.load %arg3[%c0, %c0_0] : memref<5x128xf32, #tpu.memory_space<vmem>>, vector<1x128xf32>
    %c0_1 = arith.constant 0 : index
    %1 = memref.load %arg1[%c0_1] : memref<5xf32, #tpu.memory_space<smem>>
    %2 = vector.broadcast %1 : f32 to vector<1x128xf32>
    %3 = arith.mulf %0, %2 : vector<1x128xf32>
    %c1 = arith.constant 1 : index
    %c0_2 = arith.constant 0 : index
    %4 = vector.load %arg3[%c1, %c0_2] : memref<5x128xf32, #tpu.memory_space<vmem>>, vector<1x128xf32>
    %c1_3 = arith.constant 1 : index
    %5 = memref.load %arg1[%c1_3] : memref<5xf32, #tpu.memory_space<smem>>
    %6 = vector.broadcast %5 : f32 to vector<1x128xf32>
    %7 = arith.mulf %4, %6 : vector<1x128xf32>
    %8 = arith.addf %3, %7 : vector<1x128xf32>
    %c2 = arith.constant 2 : index
    %c0_4 = arith.constant 0 : index
    %9 = vector.load %arg3[%c2, %c0_4] : memref<5x128xf32, #tpu.memory_space<vmem>>, vector<1x128xf32>
    %c2_5 = arith.constant 2 : index
    %10 = memref.load %arg1[%c2_5] : memref<5xf32, #tpu.memory_space<smem>>
    %11 = vector.broadcast %10 : f32 to vector<1x128xf32>
    %12 = arith.mulf %9, %11 : vector<1x128xf32>
    %13 = arith.addf %8, %12 : vector<1x128xf32>
    %c3 = arith.constant 3 : index
    %c0_6 = arith.constant 0 : index
    %14 = vector.load %arg3[%c3, %c0_6] : memref<5x128xf32, #tpu.memory_space<vmem>>, vector<1x128xf32>
    %c3_7 = arith.constant 3 : index
    %15 = memref.load %arg1[%c3_7] : memref<5xf32, #tpu.memory_space<smem>>
    %16 = vector.broadcast %15 : f32 to vector<1x128xf32>
    %17 = arith.mulf %14, %16 : vector<1x128xf32>
    %18 = arith.addf %13, %17 : vector<1x128xf32>
    %c4 = arith.constant 4 : index
    %c0_8 = arith.constant 0 : index
    %19 = vector.load %arg3[%c4, %c0_8] : memref<5x128xf32, #tpu.memory_space<vmem>>, vector<1x128xf32>
    %c4_9 = arith.constant 4 : index
    %20 = memref.load %arg1[%c4_9] : memref<5xf32, #tpu.memory_space<smem>>
    %21 = vector.broadcast %20 : f32 to vector<1x128xf32>
    %22 = arith.mulf %19, %21 : vector<1x128xf32>
    %23 = arith.addf %18, %22 : vector<1x128xf32>
    %c0_10 = arith.constant 0 : index
    %24 = memref.load %arg2[%c0_10] : memref<1xf32, #tpu.memory_space<smem>>
    %25 = vector.broadcast %24 : f32 to vector<1x128xf32>
    %26 = arith.addf %23, %25 : vector<1x128xf32>
    %c0_11 = arith.constant 0 : index
    %c0_12 = arith.constant 0 : index
    %27 = vector.load %arg4[%c0_11, %c0_12] : memref<1x128xf32, #tpu.memory_space<vmem>>, vector<1x128xf32>
    tpu.vector_store %arg4[%c0_11, %c0_12], %26 {strides = array<i32>} : memref<1x128xf32, #tpu.memory_space<vmem>>, vector<1x128xf32>,
    return
  }
  func.func @transform_0(%arg0: i32) -> i32 {
    %c0_i32 = arith.constant 0 : i32
    %c0_i32_0 = arith.constant 0 : i32
    return %c0_i32 : i32
  }
  func.func @transform_1(%arg0: i32) -> i32 {
    %c0_i32 = arith.constant 0 : i32
    %c0_i32_0 = arith.constant 0 : i32
    return %c0_i32 : i32
  }
  func.func @transform_2(%arg0: i32) -> (i32, i32) {
    %c0_i32 = arith.constant 0 : i32
    %c0_i32_0 = arith.constant 0 : i32
    return %c0_i32, %arg0 : i32, i32
  }
  func.func @transform_3(%arg0: i32) -> (i32, i32) {
    %c0_i32 = arith.constant 0 : i32
    %c0_i32_0 = arith.constant 0 : i32
    return %c0_i32, %arg0 : i32, i32
  }
}

</mosaic_0001>

<llo_original>
// kernel: tpu_custom_call.1
$region0: #{tpu_custom_call.1}
  #allocation0 [shape = 'u32[]', space=smem, size = 0x4, offset = 0x4, fixed_abs, tag = 'smem constant byte address 0x4 - core index']
  #allocation1 [shape = 'u32[144,128]{1,0:T(1,128)}', space=vmem, size = 0x12000, scoped, tag = 'internal scratch']
  #allocation2 [shape = 'f32[1]{0:T(128)S(6)}', space=smem, size = 0x200, scoped, tag = 'scoped memory for tpu_custom_call.1']
  %s0 = inlined_call_operand.vmem [shape: f32[5], index: 0, kind: input, shape index: {}]
  %s1 = inlined_call_operand.<no memory space> [shape: f32[1], index: 1, kind: input, shape index: {}]
  %s2 = inlined_call_operand.hbm [shape: f32[5,256], index: 2, kind: input, shape index: {}]
  %s3 = inlined_call_operand.hbm [shape: f32[1,256], index: 3, kind: output, shape index: {}]
  %s4 = sld [smem:[#allocation0]]
  $region53: #{tpu_custom_call.1} parent=0
    _
  %s6 = ssub.s32 1, %s4
  %s7 = scalar_select 0, %s6, %s4
  %8 = sst [smem:[#allocation2]] %s1
  $region1: #{tpu_custom_call.1} parent=0
    #allocation3 [shape = 'u8[512]{0}', space=smem, size = 0x200, scoped, tag = 'input window, operand 0, single buffered']
    #allocation4 [shape = 's32[2]{0}', space=sflag, size = 0x8, scoped, tag = 'scoped memory for tpu_custom_call.1']
    #allocation5 [shape = 's32[2]{0}', space=sflag, size = 0x8, scoped, tag = 'scoped memory for tpu_custom_call.1']
    #allocation6 [shape = 's32[2]{0}', space=sflag, size = 0x8, scoped, tag = 'scoped memory for tpu_custom_call.1']
    #allocation7 [shape = 'u8[8192]{0}', space=vmem, size = 0x2000, scoped, tag = 'input window, operand 2']
    #allocation8 [shape = 'u8[1024]{0}', space=vmem, size = 0x400, scoped, tag = 'output window, operand 0']
    %9 = vsyncpa [#allocation6], 0
    %10 = vsyncpa [#allocation4], 0
    %s11 = scalar_lea.sflag [#allocation4], 1
    %12 = vsyncpa %s11, 0
    %13 = vsyncpa [#allocation5], 0
    %s14 = scalar_lea.sflag [#allocation5], 1
    %15 = vsyncpa %s14, 0
    loop: start=0, step=1, limit=4
    $region2: #{tpu_custom_call.1} parent=1 // loop_pre_header
      _
    $region3: #{tpu_custom_call.1} parent=1 // loop_header
      %s17 = sphi 0, %s21
      %p18 = scmp.ge.s32.totalorder %s17, 4
      %s25 = sphi 0, %s25
      %s27 = sphi 0, %s25
      %s28 = sphi 0, %s27
      %s42 = sphi 0, %s28
      %s46 = sphi 0, %s46
      %s48 = sphi 0, %s46
      %s49 = sphi 0, %s48
      %s63 = sphi 0, %s49
      %s69 = sphi 0, %s71
      %s72 = sphi 0, %s69
      %s73 = sphi 0, %s72
      %s89 = sphi 0, %s73
      %s95 = sphi 0, %s97
      %s98 = sphi 0, %s95
      %s99 = sphi 0, %s98
      %s115 = sphi 0, %s99
    $region4: #{tpu_custom_call.1} parent=1 // loop_header_branch
      %20 = sbr.rel (%p18) target = $region8
    $region5: #{tpu_custom_call.1} parent=1 // loop_body
      %s22 = ssub.s32 %s17, 1
      %s23 = ssub.s32 %s17, 2
      %s24 = sadd.s32 %s17, 1
      %s26 = sadd.s32 %s25, 1
      %p29 = scmp.eq.s32.totalorder %s17, 1
      %p30 = scmp.ne.s32.totalorder %s25, %s27
      %p31 = scmp.eq.s32.totalorder %s17, 0
      %p32 = por %p30, %p31
      %p33 = scmp.ne.s32.totalorder %s25, %s27
      %p34 = scmp.eq.s32.totalorder %s22, 1
      %p35 = por %p33, %p34
      %p36 = scmp.ne.s32.totalorder %s27, %s28
      %p37 = scmp.eq.s32.totalorder %s22, 0
      %p38 = por %p36, %p37
      %p39 = scmp.ne.s32.totalorder %s27, %s28
      %p40 = scmp.eq.s32.totalorder %s23, 1
      %p41 = por %p39, %p40
      %p43 = scmp.ne.s32.totalorder %s28, %s42
      %p44 = scmp.eq.s32.totalorder %s23, 0
      %p45 = por %p43, %p44
      %s47 = sadd.s32 %s46, 1
      %p50 = scmp.eq.s32.totalorder %s17, 1
      %p51 = scmp.ne.s32.totalorder %s46, %s48
      %p52 = scmp.eq.s32.totalorder %s17, 0
      %p53 = por %p51, %p52
      %p54 = scmp.ne.s32.totalorder %s46, %s48
      %p55 = scmp.eq.s32.totalorder %s22, 1
      %p56 = por %p54, %p55
      %p57 = scmp.ne.s32.totalorder %s48, %s49
      %p58 = scmp.eq.s32.totalorder %s22, 0
      %p59 = por %p57, %p58
      %p60 = scmp.ne.s32.totalorder %s48, %s49
      %p61 = scmp.eq.s32.totalorder %s23, 1
      %p62 = por %p60, %p61
      %p64 = scmp.ne.s32.totalorder %s49, %s63
      %p65 = scmp.eq.s32.totalorder %s23, 0
      %p66 = por %p64, %p65
      %s67 = ssub.s32 %s17, %s24
      %p68 = scmp.eq.s32.totalorder %s67, 0
      %s70 = sadd.s32 %s69, 1
      %s71 = scalar_select %p68, %s69, %s70
      %p74 = pneg %p68
      %p75 = scmp.eq.s32.totalorder %s17, 1
      %p76 = por %p74, %p75
      %p77 = scmp.ne.s32.totalorder %s69, %s72
      %p78 = scmp.eq.s32.totalorder %s17, 0
      %p79 = por %p77, %p78
      %p80 = scmp.ne.s32.totalorder %s69, %s72
      %p81 = scmp.eq.s32.totalorder %s22, 1
      %p82 = por %p80, %p81
      %p83 = scmp.ne.s32.totalorder %s72, %s73
      %p84 = scmp.eq.s32.totalorder %s22, 0
      %p85 = por %p83, %p84
      %p86 = scmp.ne.s32.totalorder %s72, %s73
      %p87 = scmp.eq.s32.totalorder %s23, 1
      %p88 = por %p86, %p87
      %p90 = scmp.ne.s32.totalorder %s73, %s89
      %p91 = scmp.eq.s32.totalorder %s23, 0
      %p92 = por %p90, %p91
      %s93 = ssub.s32 %s17, %s24
      %p94 = scmp.eq.s32.totalorder %s93, 0
      %s96 = sadd.s32 %s95, 1
      %s97 = scalar_select %p94, %s95, %s96
      %p100 = pneg %p94
      %p101 = scmp.eq.s32.totalorder %s17, 1
      %p102 = por %p100, %p101
      %p103 = scmp.ne.s32.totalorder %s95, %s98
      %p104 = scmp.eq.s32.totalorder %s17, 0
      %p105 = por %p103, %p104
      %p106 = scmp.ne.s32.totalorder %s95, %s98
      %p107 = scmp.eq.s32.totalorder %s22, 1
      %p108 = por %p106, %p107
      %p109 = scmp.ne.s32.totalorder %s98, %s99
      %p110 = scmp.eq.s32.totalorder %s22, 0
      %p111 = por %p109, %p110
      %p112 = scmp.ne.s32.totalorder %s98, %s99
      %p113 = scmp.eq.s32.totalorder %s23, 1
      %p114 = por %p112, %p113
      %p116 = scmp.ne.s32.totalorder %s99, %s115
      %p117 = scmp.eq.s32.totalorder %s23, 0
      %p118 = por %p116, %p117
      %p119 = scmp.le.s32.totalorder 1, %s17
      %p120 = scmp.lt.s32.totalorder %s17, 3
      %p121 = pnand %p119, %p120
      %p122 = pneg %p121
      // Predicated region
      $region9: #{tpu_custom_call.1} parent=5 // pred_check
        _
      $region10: #{tpu_custom_call.1} parent=5 // pred_check_branch
        %124 = sbr.rel (%p121) target = $region12
      $region11: #{tpu_custom_call.1} parent=5 // pred_region
        %s125 = ssub.s32 %s17, 1
        // Predicated region
        $region13: #{tpu_custom_call.1} parent=11 // pred_check
          %p126 = pneg %p38
        $region14: #{tpu_custom_call.1} parent=11 // pred_check_branch
          %128 = sbr.rel (%p126) target = $region16
        $region15: #{tpu_custom_call.1} parent=11 // pred_region
          %s130 = ssub.s32 16, 16
          %131 = vsyncadd [#allocation6], %s130
          %s133 = sshll.u32 %s0, 4
          %s134 = int_to_ptr.vmem [resolvable:$true] %s133
          %136 = dma.vmem_to_smem %s134, 16, [#allocation3], [#allocation6]
        $region16: #{tpu_custom_call.1} parent=11 // pred_fallthru
          _
        // Predicated region
        $region17: #{tpu_custom_call.1} parent=11 // pred_check
          %p137 = pneg %p59
        $region18: #{tpu_custom_call.1} parent=11 // pred_check_branch
          %139 = sbr.rel (%p137) target = $region20
        $region19: #{tpu_custom_call.1} parent=11 // pred_region
          _
        $region20: #{tpu_custom_call.1} parent=11 // pred_fallthru
          _
      $region12: #{tpu_custom_call.1} parent=5 // pred_fallthru
        _
      %p140 = scmp.lt.s32.totalorder %s17, 2
      // Predicated region
      $region21: #{tpu_custom_call.1} parent=5 // pred_check
        %p141 = pneg %p140
      $region22: #{tpu_custom_call.1} parent=5 // pred_check_branch
        %143 = sbr.rel (%p141) target = $region24
      $region23: #{tpu_custom_call.1} parent=5 // pred_region
        // Predicated region
        $region25: #{tpu_custom_call.1} parent=23 // pred_check
          %p144 = pneg %p79
        $region26: #{tpu_custom_call.1} parent=23 // pred_check_branch
          %146 = sbr.rel (%p144) target = $region28
        $region27: #{tpu_custom_call.1} parent=23 // pred_region
          %s147 = sand.u32 %s69, 1
          %s148 = scalar_lea.sflag [#allocation4], %s147
          %s149 = sand.u32 %s69, 1
          %s150 = smul.addr %s149, 8
          %s151 = scalar_lea.vmem [#allocation7], %s150
          %s153 = ssub.s32 128, 128
          %154 = vsyncadd %s148, %s153
          %s155 = smul.addr %s17, 128
          %s156 = scalar_lea.hbm %s2, %s155
          %s158 = sshll.u32 %s151, 4
          %s159 = int_to_ptr.vmem [resolvable:$true] %s158
          %161 = dma.hbm_to_vmem [thread:$0]  %s156, 128, %s159, %s148
        $region28: #{tpu_custom_call.1} parent=23 // pred_fallthru
          _
      $region24: #{tpu_custom_call.1} parent=5 // pred_fallthru
        _
      %p162 = scmp.le.s32.totalorder 1, %s17
      %p163 = scmp.lt.s32.totalorder %s17, 3
      %p164 = pnand %p162, %p163
      %p165 = pneg %p164
      // Predicated region
      $region29: #{tpu_custom_call.1} parent=5 // pred_check
        _
      $region30: #{tpu_custom_call.1} parent=5 // pred_check_branch
        %167 = sbr.rel (%p164) target = $region32
      $region31: #{tpu_custom_call.1} parent=5 // pred_region
        %s168 = ssub.s32 %s17, 1
        // Predicated region
        $region33: #{tpu_custom_call.1} parent=31 // pred_check
          %p169 = pneg %p38
        $region34: #{tpu_custom_call.1} parent=31 // pred_check_branch
          %171 = sbr.rel (%p169) target = $region36
        $region35: #{tpu_custom_call.1} parent=31 // pred_region
          %172 = dma.done [#allocation6], 16
        $region36: #{tpu_custom_call.1} parent=31 // pred_fallthru
          _
        %s173 = sand.u32 %s72, 1
        %s174 = scalar_lea.sflag [#allocation4], %s173
        %s175 = sand.u32 %s72, 1
        %s176 = smul.addr %s175, 8
        %s177 = scalar_lea.vmem [#allocation7], %s176
        // Predicated region
        $region37: #{tpu_custom_call.1} parent=31 // pred_check
          %p178 = pneg %p85
        $region38: #{tpu_custom_call.1} parent=31 // pred_check_branch
          %180 = sbr.rel (%p178) target = $region40
        $region39: #{tpu_custom_call.1} parent=31 // pred_region
          %181 = dma.done %s174, 128
        $region40: #{tpu_custom_call.1} parent=31 // pred_fallthru
          _
        %182 = sfence
        %p183 = pneg %p38
        %p184 = pneg %p35
        %p185 = pneg %p59
        %p186 = pneg %p56
        %s187 = sand.u32 %s72, 1
        %s188 = scalar_lea.sflag [#allocation4], %s187
        %s189 = sand.u32 %s72, 1
        %s190 = smul.addr %s189, 8
        %s191 = scalar_lea.vmem [#allocation7], %s190
        %p192 = pneg %p85
        %p193 = pneg %p82
        %p194 = pneg %p111
        %p195 = pneg %p108
        %s196 = sand.u32 %s98, 1
        %s197 = scalar_lea.sflag [#allocation5], %s196
        %s198 = sand.u32 %s98, 1
        %s199 = scalar_lea.vmem [#allocation8], %s198
        %v200 = vld [vmem:[%s177] sm:$0x1]
        %s201 = sld [smem:[#allocation3]]
        %v202 = vstv %s201
        %v203 = vmul.f32 %v200, %v202
        %v204 = vld [vmem:[%s177 + $0x1] sm:$0x1]
        %s205 = sld [smem:[#allocation3 + $0x1]]
        %v206 = vstv %s205
        %v207 = vmul.f32 %v204, %v206
        %v208 = vadd.f32 %v203, %v207
        %v209 = vld [vmem:[%s177 + $0x2] sm:$0x1]
        %s210 = sld [smem:[#allocation3 + $0x2]]
        %v211 = vstv %s210
        %v212 = vmul.f32 %v209, %v211
        %v213 = vadd.f32 %v208, %v212
        %v214 = vld [vmem:[%s177 + $0x3] sm:$0x1]
        %s215 = sld [smem:[#allocation3 + $0x3]]
        %v216 = vstv %s215
        %v217 = vmul.f32 %v214, %v216
        %v218 = vadd.f32 %v213, %v217
        %v219 = vld [vmem:[%s177 + $0x4] sm:$0x1]
        %s220 = sld [smem:[#allocation3 + $0x4]]
        %v221 = vstv %s220
        %v222 = vmul.f32 %v219, %v221
        %v223 = vadd.f32 %v218, %v222
        %s224 = sld [smem:[#allocation2]]
        %v225 = vstv %s224
        %v226 = vadd.f32 %v223, %v225
        %227 = vst [vmem:[%s199] sm:$0x1] %v226
        %s228 = sand.u32 %s98, 1
        %s229 = scalar_lea.sflag [#allocation5], %s228
        %s230 = sand.u32 %s98, 1
        %s231 = scalar_lea.vmem [#allocation8], %s230
        // Predicated region
        $region41: #{tpu_custom_call.1} parent=31 // pred_check
          %p232 = pneg %p108
        $region42: #{tpu_custom_call.1} parent=31 // pred_check_branch
          %234 = sbr.rel (%p232) target = $region44
        $region43: #{tpu_custom_call.1} parent=31 // pred_region
          %s236 = ssub.s32 16, 16
          %237 = vsyncadd %s229, %s236
          %s238 = smul.addr %s22, 16
          %s239 = scalar_lea.hbm %s3, %s238
          %s241 = sshll.u32 %s231, 4
          %s242 = int_to_ptr.vmem [resolvable:$true] %s241
          %244 = dma.vmem_to_hbm [thread:$0]  %s242, 16, %s239, %s229
        $region44: #{tpu_custom_call.1} parent=31 // pred_fallthru
          _
      $region32: #{tpu_custom_call.1} parent=5 // pred_fallthru
        _
      %p245 = scmp.le.s32.totalorder 2, %s17
      // Predicated region
      $region45: #{tpu_custom_call.1} parent=5 // pred_check
        %p246 = pneg %p245
      $region46: #{tpu_custom_call.1} parent=5 // pred_check_branch
        %248 = sbr.rel (%p246) target = $region48
      $region47: #{tpu_custom_call.1} parent=5 // pred_region
        %s249 = ssub.s32 %s17, 2
        // Predicated region
        $region49: #{tpu_custom_call.1} parent=47 // pred_check
          %p250 = pneg %p114
        $region50: #{tpu_custom_call.1} parent=47 // pred_check_branch
          %252 = sbr.rel (%p250) target = $region52
        $region51: #{tpu_custom_call.1} parent=47 // pred_region
          %s253 = sand.u32 %s99, 1
          %s254 = scalar_lea.sflag [#allocation5], %s253
          %s255 = sand.u32 %s99, 1
          %s256 = scalar_lea.vmem [#allocation8], %s255
          %257 = dma.done %s254, 16
        $region52: #{tpu_custom_call.1} parent=47 // pred_fallthru
          _
      $region48: #{tpu_custom_call.1} parent=5 // pred_fallthru
        _
    $region6: #{tpu_custom_call.1} parent=1 // loop_footer
      %s21 = sadd.s32 1, %s17
    $region7: #{tpu_custom_call.1} parent=1 // loop_footer_branch
      %16 = sbr.rel target = $region3
    $region8: #{tpu_custom_call.1} parent=1 // loop_exit
      _
    %258 = vsyncpa [#allocation4], 1
    %s259 = scalar_lea.sflag [#allocation4], 1
    %260 = vsyncpa %s259, 1
    %261 = vsyncpa [#allocation5], 1
    %s262 = scalar_lea.sflag [#allocation5], 1
    %263 = vsyncpa %s262, 1
    %264 = vsyncpa [#allocation6], 1
    %s265 = scalar_lea.sflag [#allocation6], 1
    %266 = vsyncpa %s265, 1

</llo_original>
